<compile_context>
chip_gen: v6e
topology: v6e:2x2x1
jax: 0.10.0
libtpu: 0.0.40
codegen_flags: <defaults>
</compile_context>

<pallas_src>
import functools

import jax
import jax.numpy as jnp
from jax.experimental import pallas as pl
from jax.experimental.pallas import tpu as pltpu


def gcn_kernel(x_ref, w1t_ref, b1_ref, w2_ref, b2_ref, o_ref, *, compute_dtype):
    # x_ref block: (block_b, S, N) f32.  w1t/w2 are compute_dtype, biases f32.
    block_b, S, N = x_ref.shape

    x3 = x_ref[...]                                  # (block_b, S, N) f32
    x2 = x3.reshape(block_b * S, N)                  # leading-dim merge (S % 8 == 0)

    # conv1 (1x1 Conv1d over the node dim), one MXU matmul over the whole slab:
    #   h[(b,s), o] = sum_n x[b,s,n] * W1[o,n] + b1[o]
    h = jnp.dot(x2.astype(compute_dtype), w1t_ref[...],
                preferred_element_type=jnp.float32)  # f32 accumulation
    h = h + b1_ref[...]                              # + (1, N)
    h = h + x2                                       # residual, f32
    h = jnp.maximum(h, 0.0)                          # ReLU, f32

    # conv2 (1x1 Conv1d over the state dim): out[b] = W2 @ relu(h[b]) + b2.
    # Static unroll over the small per-step batch chunk: stays plain 2D MXU
    # matmuls with no in-kernel transposes.
    h3 = h.reshape(block_b, S, N).astype(compute_dtype)
    w2 = w2_ref[...]
    b2 = b2_ref[...]
    for b in range(block_b):
        out_b = jnp.dot(w2, h3[b], preferred_element_type=jnp.float32) + b2
        o_ref[b] = out_b.astype(o_ref.dtype)


def _pick_block_b(B, S, N, itemsize):
    """Batches per grid step: big enough to amortize per-step overhead, small
    enough for VMEM (double-buffered in+out), and leaving >= 2 grid steps so
    the parallel batch axis can shard across v7x's 2 TensorCores."""
    target_bytes = 2 * 1024 * 1024                   # per-step x-block target
    per_batch = S * N * itemsize
    bt = max(1, min(B, target_bytes // max(per_batch, 1)))
    if B >= 2:
        bt = min(bt, max(1, B // 2))                 # keep >= 2 grid steps
    while B % bt:                                    # uniform blocks only
        bt -= 1
    return bt


def gcn_forward(x, w1, b1, w2, b2, *, block_b=None, compute_dtype=jnp.bfloat16):
    """x: (B, S, N) f32; w1: (N, N); b1: (N,); w2: (S, S); b2: (S,)."""
    B, S, N = x.shape
    itemsize = jnp.dtype(x.dtype).itemsize
    if block_b is None:
        block_b = _pick_block_b(B, S, N, itemsize)
    assert B % block_b == 0
    grid_b = B // block_b

    # One-time wrapper-side prep: pre-transpose W1 (no in-kernel .T) and cast
    # the matmul weights to the MXU compute dtype.
    w1t = jnp.asarray(w1, compute_dtype).T           # (N, N), W1^T
    w2c = jnp.asarray(w2, compute_dtype)              # (S, S)
    b1_2d = jnp.asarray(b1, jnp.float32).reshape(1, N)
    b2_2d = jnp.asarray(b2, jnp.float32).reshape(S, 1)

    # Rough VMEM budget (x + out double-buffered, weights double-buffered).
    w_itemsize = jnp.dtype(compute_dtype).itemsize
    vmem_est = (2 * 2 * block_b * S * N * itemsize
                + 2 * (N * N + S * S) * w_itemsize
                + 2 * (N + S) * 4)
    compiler_kwargs = dict(dimension_semantics=("parallel",))
    if vmem_est > 32 * 1024 * 1024:
        # Only raise the scoped limit when actually needed; cap well below
        # v7x's 64 MiB/TC physical VMEM.
        compiler_kwargs["vmem_limit_bytes"] = min(int(vmem_est * 5 // 4),
                                                  48 * 1024 * 1024)

    kernel = functools.partial(gcn_kernel, compute_dtype=compute_dtype)

    return pl.pallas_call(
        kernel,
        out_shape=jax.ShapeDtypeStruct((B, S, N), x.dtype),
        grid_spec=pltpu.PrefetchScalarGridSpec(
            num_scalar_prefetch=0,
            grid=(grid_b,),
            in_specs=[
                pl.BlockSpec((block_b, S, N), lambda i: (i, 0, 0)),  # x chunk
                pl.BlockSpec((N, N), lambda i: (0, 0)),              # W1^T (resident)
                pl.BlockSpec((1, N), lambda i: (0, 0)),              # b1
                pl.BlockSpec((S, S), lambda i: (0, 0)),              # W2 (resident)
                pl.BlockSpec((S, 1), lambda i: (0, 0)),              # b2
            ],
            out_specs=pl.BlockSpec((block_b, S, N), lambda i: (i, 0, 0)),
        ),
        compiler_params=pltpu.CompilerParams(**compiler_kwargs),
    )(x, w1t, b1_2d, w2c, b2_2d)


def gcn_reference(x, w1, b1, w2, b2, compute_dtype=jnp.float32):
    """Plain-JAX reference matching the PyTorch forward (optionally mirroring
    the kernel's bf16-matmul / f32-accumulate numerics)."""
    h = jnp.einsum("bsn,on->bso", x.astype(compute_dtype),
                   w1.astype(compute_dtype),
                   preferred_element_type=jnp.float32)
    h = h + b1[None, None, :].astype(jnp.float32)
    h = h + x.astype(jnp.float32)                      # residual in f32
    h = jnp.maximum(h, 0.0)
    out = jnp.einsum("st,btn->bsn", w2.astype(compute_dtype),
                     h.astype(compute_dtype),
                     preferred_element_type=jnp.float32)
    out = out + b2[None, :, None].astype(jnp.float32)
    return out.astype(x.dtype)


if __name__ == "__main__":
    B, num_state, num_node = 2, 32, 16   # x: (B, num_state, num_node)

    key = jax.random.PRNGKey(0)
    kx, kw1, kb1, kw2, kb2 = jax.random.split(key, 5)

    x = jax.random.normal(kx, (B, num_state, num_node), dtype=jnp.float32)
    # Conv1d kernel_size=1 weights, squeezed to 2-D.
    w1 = jax.random.normal(kw1, (num_node, num_node), dtype=jnp.float32) * 0.1
    b1 = jax.random.normal(kb1, (num_node,), dtype=jnp.float32) * 0.1
    w2 = jax.random.normal(kw2, (num_state, num_state), dtype=jnp.float32) * 0.1
    b2 = jax.random.normal(kb2, (num_state,), dtype=jnp.float32) * 0.1

    out = gcn_forward(x, w1, b1, w2, b2)
    out = jax.block_until_ready(out)
    assert out.shape == (B, num_state, num_node)

    # Tight check against a reference mirroring the kernel's bf16-MXU /
    # f32-accumulate numerics.
    ref_mirror = gcn_reference(x, w1, b1, w2, b2, compute_dtype=jnp.bfloat16)
    assert jnp.allclose(out, ref_mirror, atol=1e-3, rtol=1e-3), \
        "mismatch vs bf16-matmul reference"

    # Loose semantic sanity check against the full-f32 reference.
    ref_f32 = gcn_reference(x, w1, b1, w2, b2, compute_dtype=jnp.float32)
    assert jnp.allclose(out, ref_f32, atol=1e-1, rtol=1e-1), \
        "mismatch vs f32 reference"

    print("KERNEL_OK")
</pallas_src>

<mosaic_0001>
module attributes {stable_mosaic.version = 11 : i64} {
  func.func @gcn_kernel(%arg0: i32, %arg1: memref<1x32x16xf32, #tpu.memory_space<vmem>>, %arg2: memref<16x16xbf16, #tpu.memory_space<vmem>>, %arg3: memref<1x16xf32, #tpu.memory_space<vmem>>, %arg4: memref<32x32xbf16, #tpu.memory_space<vmem>>, %arg5: memref<32x1xf32, #tpu.memory_space<vmem>>, %arg6: memref<1x32x16xf32, #tpu.memory_space<vmem>>) attributes {dimension_semantics = [#tpu.dimension_semantics<parallel>], iteration_bounds = array<i64: 2>, scalar_prefetch = 0 : i64, scratch_operands = 0 : i64, tpu.core_type = #tpu.core_type<tc>, window_params = [{transform_indices = @transform_0, window_bounds = array<i64: 1, 32, 16>}, {pipeline_mode = #tpu.pipeline_mode<synchronous>, transform_indices = @transform_1, window_bounds = array<i64: 16, 16>}, {pipeline_mode = #tpu.pipeline_mode<synchronous>, transform_indices = @transform_2, window_bounds = array<i64: 1, 16>}, {pipeline_mode = #tpu.pipeline_mode<synchronous>, transform_indices = @transform_3, window_bounds = array<i64: 32, 32>}, {pipeline_mode = #tpu.pipeline_mode<synchronous>, transform_indices = @transform_4, window_bounds = array<i64: 32, 1>}, {transform_indices = @transform_5, window_bounds = array<i64: 1, 32, 16>}]} {
    %c0 = arith.constant 0 : index
    %c0_0 = arith.constant 0 : index
    %c0_1 = arith.constant 0 : index
    %0 = vector.load %arg1[%c0, %c0_0, %c0_1] : memref<1x32x16xf32, #tpu.memory_space<vmem>>, vector<1x32x16xf32>
    %1 = vector.shape_cast %0 : vector<1x32x16xf32> to vector<32x16xf32>
    %2 = arith.truncf %1 : vector<32x16xf32> to vector<32x16xbf16>
    %c0_2 = arith.constant 0 : index
    %c0_3 = arith.constant 0 : index
    %3 = vector.load %arg2[%c0_2, %c0_3] : memref<16x16xbf16, #tpu.memory_space<vmem>>, vector<16x16xbf16>
    %cst = arith.constant dense<0.000000e+00> : vector<32x16xf32>
    %4 = tpu.matmul %2, %3, %cst {dimension_numbers = #tpu.dot_dimension_numbers<[1], [0], [0], [1], [0, 0, 1, 1], [], []>} : vector<32x16xbf16>, vector<16x16xbf16>, vector<32x16xf32> -> vector<32x16xf32>
    %c0_4 = arith.constant 0 : index
    %c0_5 = arith.constant 0 : index
    %5 = vector.load %arg3[%c0_4, %c0_5] : memref<1x16xf32, #tpu.memory_space<vmem>>, vector<1x16xf32>
    %6 = vector.broadcast %5 : vector<1x16xf32> to vector<32x16xf32>
    %7 = arith.addf %4, %6 : vector<32x16xf32>
    %8 = arith.addf %7, %1 : vector<32x16xf32>
    %cst_6 = arith.constant 0.000000e+00 : f32
    %9 = vector.broadcast %cst_6 : f32 to vector<32x16xf32>
    %10 = arith.maximumf %8, %9 : vector<32x16xf32>
    %11 = vector.shape_cast %10 : vector<32x16xf32> to vector<1x32x16xf32>
    %12 = arith.truncf %11 : vector<1x32x16xf32> to vector<1x32x16xbf16>
    %c0_7 = arith.constant 0 : index
    %c0_8 = arith.constant 0 : index
    %13 = vector.load %arg4[%c0_7, %c0_8] : memref<32x32xbf16, #tpu.memory_space<vmem>>, vector<32x32xbf16>
    %c0_9 = arith.constant 0 : index
    %c0_10 = arith.constant 0 : index
    %14 = vector.load %arg5[%c0_9, %c0_10] : memref<32x1xf32, #tpu.memory_space<vmem>>, vector<32x1xf32>
    %15 = vector.shape_cast %12 : vector<1x32x16xbf16> to vector<32x16xbf16>
    %cst_11 = arith.constant dense<0.000000e+00> : vector<32x16xf32>
    %16 = tpu.matmul %13, %15, %cst_11 {dimension_numbers = #tpu.dot_dimension_numbers<[1], [0], [0], [1], [0, 0, 1, 1], [], []>} : vector<32x32xbf16>, vector<32x16xbf16>, vector<32x16xf32> -> vector<32x16xf32>
    %17 = vector.broadcast %14 : vector<32x1xf32> to vector<32x16xf32>
    %18 = arith.addf %16, %17 : vector<32x16xf32>
    %c0_12 = arith.constant 0 : index
    %c0_13 = arith.constant 0 : index
    %c0_14 = arith.constant 0 : index
    %19 = vector.load %arg6[%c0_12, %c0_13, %c0_14] : memref<1x32x16xf32, #tpu.memory_space<vmem>>, vector<1x32x16xf32>
    %20 = vector.shape_cast %19 : vector<1x32x16xf32> to vector<32x16xf32>
    %21 = vector.shape_cast %18 : vector<32x16xf32> to vector<1x32x16xf32>
    tpu.vector_store %arg6[%c0_12, %c0_13, %c0_14], %21 {strides = array<i32>} : memref<1x32x16xf32, #tpu.memory_space<vmem>>, vector<1x32x16xf32>,
    return
  }
  func.func @transform_0(%arg0: i32) -> (i32, i32, i32) {
    %c0_i32 = arith.constant 0 : i32
    %c0_i32_0 = arith.constant 0 : i32
    %c0_i32_1 = arith.constant 0 : i32
    return %arg0, %c0_i32, %c0_i32_0 : i32, i32, i32
  }
  func.func @transform_1(%arg0: i32) -> (i32, i32) {
    %c0_i32 = arith.constant 0 : i32
    %c0_i32_0 = arith.constant 0 : i32
    %c0_i32_1 = arith.constant 0 : i32
    return %c0_i32, %c0_i32_0 : i32, i32
  }
  func.func @transform_2(%arg0: i32) -> (i32, i32) {
    %c0_i32 = arith.constant 0 : i32
    %c0_i32_0 = arith.constant 0 : i32
    %c0_i32_1 = arith.constant 0 : i32
    return %c0_i32, %c0_i32_0 : i32, i32
  }
  func.func @transform_3(%arg0: i32) -> (i32, i32) {
    %c0_i32 = arith.constant 0 : i32
    %c0_i32_0 = arith.constant 0 : i32
    %c0_i32_1 = arith.constant 0 : i32
    return %c0_i32, %c0_i32_0 : i32, i32
  }
  func.func @transform_4(%arg0: i32) -> (i32, i32) {
    %c0_i32 = arith.constant 0 : i32
    %c0_i32_0 = arith.constant 0 : i32
    %c0_i32_1 = arith.constant 0 : i32
    return %c0_i32, %c0_i32_0 : i32, i32
  }
  func.func @transform_5(%arg0: i32) -> (i32, i32, i32) {
    %c0_i32 = arith.constant 0 : i32
    %c0_i32_0 = arith.constant 0 : i32
    %c0_i32_1 = arith.constant 0 : i32
    return %arg0, %c0_i32, %c0_i32_0 : i32, i32, i32
  }
}

</mosaic_0001>

<llo_original>
// kernel: tpu_custom_call.1
$region0: #{tpu_custom_call.1}
  #allocation0 [shape = 'u32[]', space=smem, size = 0x4, offset = 0x4, fixed_abs, tag = 'smem constant byte address 0x4 - core index']
  #allocation1 [shape = 'u32[144,128]{1,0:T(1,128)}', space=vmem, size = 0x12000, scoped, tag = 'internal scratch']
  %s0 = inlined_call_operand.vmem [shape: f32[2,32,16], index: 0, kind: input, shape index: {}]
  %s1 = inlined_call_operand.vmem [shape: bf16[16,16], index: 1, kind: input, shape index: {}]
  %s2 = inlined_call_operand.vmem [shape: f32[1,16], index: 2, kind: input, shape index: {}]
  %s3 = inlined_call_operand.vmem [shape: bf16[32,32], index: 3, kind: input, shape index: {}]
  %s4 = inlined_call_operand.vmem [shape: f32[32,1], index: 4, kind: input, shape index: {}]
  %s5 = inlined_call_operand.vmem [shape: f32[2,32,16], index: 5, kind: output, shape index: {}]
  %s6 = sld [smem:[#allocation0]]
  $region53: #{tpu_custom_call.1} parent=0
    _
  %s8 = ssub.s32 1, %s6
  %s9 = scalar_select 0, %s8, %s6
  loop: start=0, step=1, limit=4
  $region2: #{tpu_custom_call.1} parent=0 // loop_pre_header
    _
  $region3: #{tpu_custom_call.1} parent=0 // loop_header
    %s11 = sphi 0, %s15
    %p12 = scmp.ge.s32.totalorder %s11, 4
    %s21 = sphi 0, %s23
    %s24 = sphi 0, %s21
    %s25 = sphi 0, %s24
    %s41 = sphi 0, %s25
    %s45 = sphi 0, %s45
    %s47 = sphi 0, %s45
    %s48 = sphi 0, %s47
    %s62 = sphi 0, %s48
    %s66 = sphi 0, %s66
    %s68 = sphi 0, %s66
    %s69 = sphi 0, %s68
    %s83 = sphi 0, %s69
    %s87 = sphi 0, %s87
    %s89 = sphi 0, %s87
    %s90 = sphi 0, %s89
    %s104 = sphi 0, %s90
    %s108 = sphi 0, %s108
    %s110 = sphi 0, %s108
    %s111 = sphi 0, %s110
    %s125 = sphi 0, %s111
    %s131 = sphi 0, %s133
    %s134 = sphi 0, %s131
    %s135 = sphi 0, %s134
    %s151 = sphi 0, %s135
  $region4: #{tpu_custom_call.1} parent=0 // loop_header_branch
    %14 = sbr.rel (%p12) target = $region8
  $region5: #{tpu_custom_call.1} parent=0 // loop_body
    %s16 = ssub.s32 %s11, 1
    %s17 = ssub.s32 %s11, 2
    %s18 = sadd.s32 %s11, 1
    %s19 = ssub.s32 %s11, %s18
    %p20 = scmp.eq.s32.totalorder %s19, 0
    %s22 = sadd.s32 %s21, 1
    %s23 = scalar_select %p20, %s21, %s22
    %p26 = pneg %p20
    %p27 = scmp.eq.s32.totalorder %s11, 1
    %p28 = por %p26, %p27
    %p29 = scmp.ne.s32.totalorder %s21, %s24
    %p30 = scmp.eq.s32.totalorder %s11, 0
    %p31 = por %p29, %p30
    %p32 = scmp.ne.s32.totalorder %s21, %s24
    %p33 = scmp.eq.s32.totalorder %s16, 1
    %p34 = por %p32, %p33
    %p35 = scmp.ne.s32.totalorder %s24, %s25
    %p36 = scmp.eq.s32.totalorder %s16, 0
    %p37 = por %p35, %p36
    %p38 = scmp.ne.s32.totalorder %s24, %s25
    %p39 = scmp.eq.s32.totalorder %s17, 1
    %p40 = por %p38, %p39
    %p42 = scmp.ne.s32.totalorder %s25, %s41
    %p43 = scmp.eq.s32.totalorder %s17, 0
    %p44 = por %p42, %p43
    %s46 = sadd.s32 %s45, 1
    %p49 = scmp.eq.s32.totalorder %s11, 1
    %p50 = scmp.ne.s32.totalorder %s45, %s47
    %p51 = scmp.eq.s32.totalorder %s11, 0
    %p52 = por %p50, %p51
    %p53 = scmp.ne.s32.totalorder %s45, %s47
    %p54 = scmp.eq.s32.totalorder %s16, 1
    %p55 = por %p53, %p54
    %p56 = scmp.ne.s32.totalorder %s47, %s48
    %p57 = scmp.eq.s32.totalorder %s16, 0
    %p58 = por %p56, %p57
    %p59 = scmp.ne.s32.totalorder %s47, %s48
    %p60 = scmp.eq.s32.totalorder %s17, 1
    %p61 = por %p59, %p60
    %p63 = scmp.ne.s32.totalorder %s48, %s62
    %p64 = scmp.eq.s32.totalorder %s17, 0
    %p65 = por %p63, %p64
    %s67 = sadd.s32 %s66, 1
    %p70 = scmp.eq.s32.totalorder %s11, 1
    %p71 = scmp.ne.s32.totalorder %s66, %s68
    %p72 = scmp.eq.s32.totalorder %s11, 0
    %p73 = por %p71, %p72
    %p74 = scmp.ne.s32.totalorder %s66, %s68
    %p75 = scmp.eq.s32.totalorder %s16, 1
    %p76 = por %p74, %p75
    %p77 = scmp.ne.s32.totalorder %s68, %s69
    %p78 = scmp.eq.s32.totalorder %s16, 0
    %p79 = por %p77, %p78
    %p80 = scmp.ne.s32.totalorder %s68, %s69
    %p81 = scmp.eq.s32.totalorder %s17, 1
    %p82 = por %p80, %p81
    %p84 = scmp.ne.s32.totalorder %s69, %s83
    %p85 = scmp.eq.s32.totalorder %s17, 0
    %p86 = por %p84, %p85
    %s88 = sadd.s32 %s87, 1
    %p91 = scmp.eq.s32.totalorder %s11, 1
    %p92 = scmp.ne.s32.totalorder %s87, %s89
    %p93 = scmp.eq.s32.totalorder %s11, 0
    %p94 = por %p92, %p93
    %p95 = scmp.ne.s32.totalorder %s87, %s89
    %p96 = scmp.eq.s32.totalorder %s16, 1
    %p97 = por %p95, %p96
    %p98 = scmp.ne.s32.totalorder %s89, %s90
    %p99 = scmp.eq.s32.totalorder %s16, 0
    %p100 = por %p98, %p99
    %p101 = scmp.ne.s32.totalorder %s89, %s90
    %p102 = scmp.eq.s32.totalorder %s17, 1
    %p103 = por %p101, %p102
    %p105 = scmp.ne.s32.totalorder %s90, %s104
    %p106 = scmp.eq.s32.totalorder %s17, 0
    %p107 = por %p105, %p106
    %s109 = sadd.s32 %s108, 1
    %p112 = scmp.eq.s32.totalorder %s11, 1
    %p113 = scmp.ne.s32.totalorder %s108, %s110
    %p114 = scmp.eq.s32.totalorder %s11, 0
    %p115 = por %p113, %p114
    %p116 = scmp.ne.s32.totalorder %s108, %s110
    %p117 = scmp.eq.s32.totalorder %s16, 1
    %p118 = por %p116, %p117
    %p119 = scmp.ne.s32.totalorder %s110, %s111
    %p120 = scmp.eq.s32.totalorder %s16, 0
    %p121 = por %p119, %p120
    %p122 = scmp.ne.s32.totalorder %s110, %s111
    %p123 = scmp.eq.s32.totalorder %s17, 1
    %p124 = por %p122, %p123
    %p126 = scmp.ne.s32.totalorder %s111, %s125
    %p127 = scmp.eq.s32.totalorder %s17, 0
    %p128 = por %p126, %p127
    %s129 = ssub.s32 %s11, %s18
    %p130 = scmp.eq.s32.totalorder %s129, 0
    %s132 = sadd.s32 %s131, 1
    %s133 = scalar_select %p130, %s131, %s132
    %p136 = pneg %p130
    %p137 = scmp.eq.s32.totalorder %s11, 1
    %p138 = por %p136, %p137
    %p139 = scmp.ne.s32.totalorder %s131, %s134
    %p140 = scmp.eq.s32.totalorder %s11, 0
    %p141 = por %p139, %p140
    %p142 = scmp.ne.s32.totalorder %s131, %s134
    %p143 = scmp.eq.s32.totalorder %s16, 1
    %p144 = por %p142, %p143
    %p145 = scmp.ne.s32.totalorder %s134, %s135
    %p146 = scmp.eq.s32.totalorder %s16, 0
    %p147 = por %p145, %p146
    %p148 = scmp.ne.s32.totalorder %s134, %s135
    %p149 = scmp.eq.s32.totalorder %s17, 1
    %p150 = por %p148, %p149
    %p152 = scmp.ne.s32.totalorder %s135, %s151
    %p153 = scmp.eq.s32.totalorder %s17, 0
    %p154 = por %p152, %p153
    %p155 = scmp.le.s32.totalorder 1, %s11
    %p156 = scmp.lt.s32.totalorder %s11, 3
    %p157 = pnand %p155, %p156
    %p158 = pneg %p157
    // Predicated region
    $region9: #{tpu_custom_call.1} parent=5 // pred_check
      _
    $region10: #{tpu_custom_call.1} parent=5 // pred_check_branch
      %160 = sbr.rel (%p157) target = $region12
    $region11: #{tpu_custom_call.1} parent=5 // pred_region
      %s161 = ssub.s32 %s11, 1
      // Predicated region
      $region13: #{tpu_custom_call.1} parent=11 // pred_check
        %p162 = pneg %p58
      $region14: #{tpu_custom_call.1} parent=11 // pred_check_branch
        %164 = sbr.rel (%p162) target = $region16
      $region15: #{tpu_custom_call.1} parent=11 // pred_region
        _
      $region16: #{tpu_custom_call.1} parent=11 // pred_fallthru
        _
      // Predicated region
      $region17: #{tpu_custom_call.1} parent=11 // pred_check
        %p165 = pneg %p79
      $region18: #{tpu_custom_call.1} parent=11 // pred_check_branch
        %167 = sbr.rel (%p165) target = $region20
      $region19: #{tpu_custom_call.1} parent=11 // pred_region
        _
      $region20: #{tpu_custom_call.1} parent=11 // pred_fallthru
        _
      // Predicated region
      $region21: #{tpu_custom_call.1} parent=11 // pred_check
        %p168 = pneg %p100
      $region22: #{tpu_custom_call.1} parent=11 // pred_check_branch
        %170 = sbr.rel (%p168) target = $region24
      $region23: #{tpu_custom_call.1} parent=11 // pred_region
        _
      $region24: #{tpu_custom_call.1} parent=11 // pred_fallthru
        _
      // Predicated region
      $region25: #{tpu_custom_call.1} parent=11 // pred_check
        %p171 = pneg %p121
      $region26: #{tpu_custom_call.1} parent=11 // pred_check_branch
        %173 = sbr.rel (%p171) target = $region28
      $region27: #{tpu_custom_call.1} parent=11 // pred_region
        _
      $region28: #{tpu_custom_call.1} parent=11 // pred_fallthru
        _
    $region12: #{tpu_custom_call.1} parent=5 // pred_fallthru
      _
    %p174 = scmp.lt.s32.totalorder %s11, 2
    // Predicated region
    $region29: #{tpu_custom_call.1} parent=5 // pred_check
      %p175 = pneg %p174
    $region30: #{tpu_custom_call.1} parent=5 // pred_check_branch
      %177 = sbr.rel (%p175) target = $region32
    $region31: #{tpu_custom_call.1} parent=5 // pred_region
      // Predicated region
      $region33: #{tpu_custom_call.1} parent=31 // pred_check
        %p178 = pneg %p31
      $region34: #{tpu_custom_call.1} parent=31 // pred_check_branch
        %180 = sbr.rel (%p178) target = $region36
      $region35: #{tpu_custom_call.1} parent=31 // pred_region
        %p181 = scmp.lt.s32.totalorder %s11, 1
        %s182 = scalar_select %p181, %s11, 1
        %s183 = smul.addr %s182, 4
        %s184 = smul.addr %s183, 8
        %s185 = scalar_lea.vmem %s0, %s184
      $region36: #{tpu_custom_call.1} parent=31 // pred_fallthru
        _
    $region32: #{tpu_custom_call.1} parent=5 // pred_fallthru
      _
    %p186 = scmp.le.s32.totalorder 1, %s11
    %p187 = scmp.lt.s32.totalorder %s11, 3
    %p188 = pnand %p186, %p187
    %p189 = pneg %p188
    // Predicated region
    $region37: #{tpu_custom_call.1} parent=5 // pred_check
      _
    $region38: #{tpu_custom_call.1} parent=5 // pred_check_branch
      %191 = sbr.rel (%p188) target = $region40
    $region39: #{tpu_custom_call.1} parent=5 // pred_region
      %s192 = ssub.s32 %s11, 1
      %p193 = scmp.lt.s32.totalorder %s16, 1
      %s194 = scalar_select %p193, %s16, 1
      %s195 = smul.addr %s194, 4
      %s196 = smul.addr %s195, 8
      %s197 = scalar_lea.vmem %s0, %s196
      %p198 = pneg %p37
      %p199 = pneg %p34
      %p200 = pneg %p58
      %p201 = pneg %p55
      %p202 = pneg %p79
      %p203 = pneg %p76
      %p204 = pneg %p100
      %p205 = pneg %p97
      %p206 = pneg %p121
      %p207 = pneg %p118
      %p208 = pneg %p147
      %p209 = pneg %p144
      %p210 = scmp.lt.s32.totalorder %s16, 1
      %s211 = scalar_select %p210, %s16, 1
      %s212 = smul.addr %s211, 4
      %s213 = smul.addr %s212, 8
      %s214 = scalar_lea.vmem %s5, %s213
      %p215 = scmp.lt.s32.totalorder %s16, 1
      %s216 = scalar_select %p215, %s16, 1
      %s217 = smul.addr %s216, 4
      %s218 = smul.addr %s217, 8
      %s219 = scalar_lea.vmem %s0, %s218
      %p220 = scmp.lt.s32.totalorder %s16, 1
      %s221 = scalar_select %p220, %s16, 1
      %s222 = smul.addr %s221, 4
      %s223 = smul.addr %s222, 8
      %s224 = scalar_lea.vmem %s5, %s223
      %v226 = vld [vmem:[%s219] sm:$0xff]
      %v227 = vld [vmem:[%s219 + $0x8] sm:$0xff]
      %v228 = vld [vmem:[%s219 + $0x10] sm:$0xff]
      %v229 = vld [vmem:[%s219 + $0x18] sm:$0xff]
      %v230 = vpack.c.bf16 %v227, %v226
      %v231 = vpack.c.bf16 %v229, %v228
      %v232 = vld [vmem:[%s1] sm:$0xf]
      %v233 = vld [vmem:[%s1 + $0x4] sm:$0xf]
      %v234 = vld [vmem:[%s2] sm:$0x1]
      %v236 = vlaneseq
      %v237 = vshrl.u32 %v236, 7
      %v238 = vsub.s32 0, %v237
      %v239 = vrot.slane %v234, %v238
      %v243 = vunpack.c.l.b16 %v232
      %v244 = vunpack.c.l.b16 %v233
      %v245 = vpack.c.b16 %v244, %v243
      %vm247 = vcmask 130048
      %v249 = vsel %vm247, %v230, 0
      %v252 = vsel %vm247, %v231, 0
      %254 = vmatprep.subr.bf16.mxu0 0
      %255 = vmatpush1.bf16.msra.mxu0 0
      %256 = vmatprep.subr.bf16.mxu0 0
      %257 = vmatpush1.bf16.msra.mxu0 0
      %258 = vmatprep.subr.bf16.mxu0 0
      %259 = vmatpush1.bf16.msra.mxu0 0
      %260 = vmatprep.subr.bf16.mxu0 0
      %261 = vmatpush1.bf16.msra.mxu0 0
      %262 = vmatprep.subr.bf16.mxu0 0
      %263 = vmatpush1.bf16.msra.mxu0 0
      %264 = vmatprep.subr.bf16.mxu0 0
      %265 = vmatpush1.bf16.msra.mxu0 0
      %266 = vmatprep.subr.bf16.mxu0 0
      %267 = vmatpush1.bf16.msra.mxu0 0
      %268 = vmatprep.subr.bf16.mxu0 0
      %269 = vmatpush1.bf16.msra.mxu0 %v245
      %270 = vmatprep.subr.bf16.mxu0 0
      %271 = vmatpush2.bf16.msra.mxu0 0
      %272 = vmatprep.subr.bf16.mxu0 0
      %273 = vmatpush2.bf16.msra.mxu0 0
      %274 = vmatprep.subr.bf16.mxu0 0
      %275 = vmatpush2.bf16.msra.mxu0 0
      %276 = vmatprep.subr.bf16.mxu0 0
      %277 = vmatpush2.bf16.msra.mxu0 0
      %278 = vmatprep.subr.bf16.mxu0 0
      %279 = vmatpush2.bf16.msra.mxu0 0
      %280 = vmatprep.subr.bf16.mxu0 0
      %281 = vmatpush2.bf16.msra.mxu0 0
      %282 = vmatprep.subr.bf16.mxu0 0
      %283 = vmatpush2.bf16.msra.mxu0 0
      %284 = vmatprep.subr.bf16.mxu0 0
      %285 = vmatpush2.bf16.msra.mxu0 0
      %286 = vmatprep.mubr.bf16.mxu0 0
      %287 = vmatmul.mubr.bf16.gmra.mxu0 %v249
      %v288 = vpop.f32.mrf.mxu0
      %v289 = vadd.f32 %v239, %v288
      %v290 = vpop.f32.mrf.mxu0
      %v291 = vpop.f32.mrf.mxu0
      %v292 = vadd.f32 %v239, %v291
      %v293 = vpop.f32.mrf.mxu0
      %294 = vmatprep.mubr.bf16.mxu0 0
      %295 = vmatmul.mubr.bf16.gmra.mxu0 %v252
      %v296 = vpop.f32.mrf.mxu0
      %v297 = vadd.f32 %v239, %v296
      %v298 = vpop.f32.mrf.mxu0
      %v299 = vpop.f32.mrf.mxu0
      %v300 = vadd.f32 %v239, %v299
      %v301 = vpop.f32.mrf.mxu0
      %302 = vdwg.mxu0
      %v303 = vadd.f32 %v289, %v226
      %v304 = vadd.f32 %v292, %v227
      %v305 = vadd.f32 %v297, %v228
      %v306 = vadd.f32 %v300, %v229
      %v307 = vmax.f32 %v303, 0.0
      %v308 = vmax.f32 %v304, 0.0
      %v309 = vmax.f32 %v305, 0.0
      %v310 = vmax.f32 %v306, 0.0
      %v311 = vpack.c.bf16 %v308, %v307
      %v312 = vpack.c.bf16 %v310, %v309
      %v313 = vld [vmem:[%s3] sm:$0xf]
      %v314 = vld [vmem:[%s3 + $0x4] sm:$0xf]
      %v315 = vld [vmem:[%s3 + $0x8] sm:$0xf]
      %v316 = vld [vmem:[%s3 + $0xc] sm:$0xf]
      %v317 = vld [vmem:[%s4] sm:$0xff]
      %v318 = vld [vmem:[%s4 + $0x8] sm:$0xff]
      %v319 = vld [vmem:[%s4 + $0x10] sm:$0xff]
      %v320 = vld [vmem:[%s4 + $0x18] sm:$0xff]
      %322 = vset.pattern.permute.xlu0 0
      %323 = vperm.xlu0 %322, %v317
      %v324 = vpop.permute.xlu0 %323
      %327 = vset.pattern.permute.xlu0 0
      %328 = vperm.xlu0 %327, %v318
      %v329 = vpop.permute.xlu0 %328
      %332 = vset.pattern.permute.xlu0 0
      %333 = vperm.xlu0 %332, %v319
      %v334 = vpop.permute.xlu0 %333
      %337 = vset.pattern.permute.xlu0 0
      %338 = vperm.xlu0 %337, %v320
      %v339 = vpop.permute.xlu0 %338
      %v345 = vunpack.c.l.b16 %v313
      %v346 = vunpack.c.l.b16 %v314
      %v347 = vunpack.c.l.b16 %v315
      %v348 = vunpack.c.l.b16 %v316
      %v349 = vpack.c.b16 %v346, %v345
      %v350 = vpack.c.b16 %v348, %v347
      %vm351 = vcmask 261120
      %v353 = vsel %vm351, %v349, 0
      %v356 = vsel %vm351, %v350, 0
      %358 = vmatprep.subr.bf16.mxu0 0
      %359 = vmatpush1.bf16.msra.mxu0 0
      %360 = vmatprep.subr.bf16.mxu0 0
      %361 = vmatpush1.bf16.msra.mxu0 0
      %362 = vmatprep.subr.bf16.mxu0 0
      %363 = vmatpush1.bf16.msra.mxu0 0
      %364 = vmatprep.subr.bf16.mxu0 0
      %365 = vmatpush1.bf16.msra.mxu0 0
      %366 = vmatprep.subr.bf16.mxu0 0
      %367 = vmatpush1.bf16.msra.mxu0 0
      %368 = vmatprep.subr.bf16.mxu0 0
      %369 = vmatpush1.bf16.msra.mxu0 0
      %370 = vmatprep.subr.bf16.mxu0 0
      %371 = vmatpush1.bf16.msra.mxu0 %v312
      %372 = vmatprep.subr.bf16.mxu0 0
      %373 = vmatpush1.bf16.msra.mxu0 %v311
      %374 = vmatprep.subr.bf16.mxu0 0
      %375 = vmatpush2.bf16.msra.mxu0 0
      %376 = vmatprep.subr.bf16.mxu0 0
      %377 = vmatpush2.bf16.msra.mxu0 0
      %378 = vmatprep.subr.bf16.mxu0 0
      %379 = vmatpush2.bf16.msra.mxu0 0
      %380 = vmatprep.subr.bf16.mxu0 0
      %381 = vmatpush2.bf16.msra.mxu0 0
      %382 = vmatprep.subr.bf16.mxu0 0
      %383 = vmatpush2.bf16.msra.mxu0 0
      %384 = vmatprep.subr.bf16.mxu0 0
      %385 = vmatpush2.bf16.msra.mxu0 0
      %386 = vmatprep.subr.bf16.mxu0 0
      %387 = vmatpush2.bf16.msra.mxu0 0
      %388 = vmatprep.subr.bf16.mxu0 0
      %389 = vmatpush2.bf16.msra.mxu0 0
      %390 = vmatprep.mubr.bf16.mxu0 0
      %391 = vmatmul.mubr.bf16.gmra.mxu0 %v353
      %v392 = vpop.f32.mrf.mxu0
      %v393 = vadd.f32 %v324, %v392
      %v394 = vpop.f32.mrf.mxu0
      %v395 = vpop.f32.mrf.mxu0
      %v396 = vadd.f32 %v329, %v395
      %v397 = vpop.f32.mrf.mxu0
      %398 = vmatprep.mubr.bf16.mxu0 0
      %399 = vmatmul.mubr.bf16.gmra.mxu0 %v356
      %v400 = vpop.f32.mrf.mxu0
      %v401 = vadd.f32 %v334, %v400
      %v402 = vpop.f32.mrf.mxu0
      %v403 = vpop.f32.mrf.mxu0
      %v404 = vadd.f32 %v339, %v403
      %v405 = vpop.f32.mrf.mxu0
      %406 = vdwg.mxu0
      %407 = vst.msk [vmem:[%s224] sm:$0xff] %vm247, %v393
      %408 = vst.msk [vmem:[%s224 + $0x8] sm:$0xff] %vm247, %v396
      %409 = vst.msk [vmem:[%s224 + $0x10] sm:$0xff] %vm247, %v401
      %410 = vst.msk [vmem:[%s224 + $0x18] sm:$0xff] %vm247, %v404
      %p411 = scmp.lt.s32.totalorder %s16, 1
      %s412 = scalar_select %p411, %s16, 1
      %s413 = smul.addr %s412, 4
      %s414 = smul.addr %s413, 8
      %s415 = scalar_lea.vmem %s5, %s414
      // Predicated region
      $region41: #{tpu_custom_call.1} parent=39 // pred_check
        %p416 = pneg %p144
      $region42: #{tpu_custom_call.1} parent=39 // pred_check_branch
        %418 = sbr.rel (%p416) target = $region44
      $region43: #{tpu_custom_call.1} parent=39 // pred_region
        _
      $region44: #{tpu_custom_call.1} parent=39 // pred_fallthru
        _
    $region40: #{tpu_custom_call.1} parent=5 // pred_fallthru
      _
    %p419 = scmp.le.s32.totalorder 2, %s11
    // Predicated region
    $region45: #{tpu_custom_call.1} parent=5 // pred_check
      %p420 = pneg %p419
    $region46: #{tpu_custom_call.1} parent=5 // pred_check_branch
      %422 = sbr.rel (%p420) target = $region48
    $region47: #{tpu_custom_call.1} parent=5 // pred_region
      %s423 = ssub.s32 %s11, 2
      // Predicated region
      $region49: #{tpu_custom_call.1} parent=47 // pred_check
        %p424 = pneg %p150
      $region50: #{tpu_custom_call.1} parent=47 // pred_check_branch
        %426 = sbr.rel (%p424) target = $region52
      $region51: #{tpu_custom_call.1} parent=47 // pred_region
        %p427 = scmp.lt.s32.totalorder %s17, 1
        %s428 = scalar_select %p427, %s17, 1
        %s429 = smul.addr %s428, 4
        %s430 = smul.addr %s429, 8
        %s431 = scalar_lea.vmem %s5, %s430
      $region52: #{tpu_custom_call.1} parent=47 // pred_fallthru
        _
    $region48: #{tpu_custom_call.1} parent=5 // pred_fallthru
      _
  $region6: #{tpu_custom_call.1} parent=0 // loop_footer
    %s15 = sadd.s32 1, %s11
  $region7: #{tpu_custom_call.1} parent=0 // loop_footer_branch
    %10 = sbr.rel target = $region3
  $region8: #{tpu_custom_call.1} parent=0 // loop_exit
    _

</llo_original>
